<compile_context>
chip_gen: v6e
topology: v6e:2x2x1
jax: 0.10.0
libtpu: 0.0.40
codegen_flags: <defaults>
</compile_context>

<pallas_src>
import functools

import jax
import jax.numpy as jnp
import numpy as np
from jax.experimental import pallas as pl
from jax.experimental.pallas import tpu as pltpu

# ----- fixed module configuration ----------------------------------------------------
NUM_FOURIER_FEATURES = 14
NUM_TIME_FOURIER = 2
NUM_POS_FOURIER = NUM_FOURIER_FEATURES - NUM_TIME_FOURIER   # 12
NUM_INPUT = 4          # 3 position + 1 time
NUM_DIRECT = 4         # 3 position + 1 time (use_time_direct=True)
FOURIER_STD = 1.0
TWO_PI = 2.0 * np.pi


def _round_up(a, b):
    return ((a + b - 1) // b) * b


# ----- Pallas kernel (channels-first tile) --------------------------------------------
def input_param_kernel(x_ref, b_ref, bt_ref, o_ref):
    """One batch tile, channels-first.

    x_ref : (cin, tn)   input tile  (channels on sublanes, batch on lanes)
    b_ref : (12, 3)     B  (already premultiplied by 2*pi)
    bt_ref: (2, 1)      B_time
    o_ref : (cout, tn)  output tile (channels on sublanes, batch on lanes)
    """
    extra = x_ref.shape[0] - NUM_INPUT          # static

    x = x_ref[...]                              # single full-tile, lane-dense load
    b = b_ref[...]                              # (12, 3), resident across grid steps
    bt = bt_ref[...]                            # (2, 1)

    # Position Fourier features: f = B @ x_pos done as 3 broadcasted VPU mul-adds
    # (K=3 is far too small for the MXU; everything stays lane-dense).
    f = (b[:, 0:1] * x[0:1, :]
         + b[:, 1:2] * x[1:2, :]
         + b[:, 2:3] * x[2:3, :])               # (12, tn)

    # Time Fourier features.
    ft = bt * x[3:4, :]                         # (2, 1) * (1, tn) -> (2, tn)

    parts = [
        x[0:NUM_DIRECT, :],                     # direct channels (pos + time)
        jnp.cos(f), jnp.sin(f),
        jnp.cos(ft), jnp.sin(ft),
    ]
    if extra > 0:
        parts.append(x[NUM_INPUT:, :])          # extra latent channels pass through

    # Assemble the whole tile in registers and do ONE sublane-aligned store
    # (avoids masked/partial vst on slices like [4:16] that straddle 8-sublane
    # vreg boundaries; v5e has a single store slot per bundle).
    out = jnp.concatenate(parts, axis=0)        # (cout, tn)
    o_ref[...] = out.astype(o_ref.dtype)


# ----- channels-first entry point (no layout plumbing) --------------------------------
@functools.partial(jax.jit, static_argnames=("tn", "out_dtype"))
def input_parametrization_cf(x_cf, B, B_time, *, tn=32768, out_dtype=None):
    """x_cf: (cin, n) channels-first input (cin >= 4; extra latent channels appended).
    Returns (cout, n) channels-first output, cout = 32 + (cin - 4).

    This is the fast path: callers should keep their data channels-first (batch
    on the lane axis) and feed the result straight into the first MLP matmul.
    """
    cin, n = x_cf.shape
    extra = cin - NUM_INPUT
    assert extra >= 0, f"need at least {NUM_INPUT} channels, got {cin}"
    cout = NUM_DIRECT + 2 * NUM_POS_FOURIER + 2 * NUM_TIME_FOURIER + extra
    odt = x_cf.dtype if out_dtype is None else jnp.dtype(out_dtype)

    # Batch tile on the 128-wide lane axis.
    #  * Default 32768 samples ~ 10 MiB double-buffered VMEM (in+out, f32):
    #    fits v5e's 16 MiB default scoped-VMEM limit, far under v6e/v7x.
    #    (Going beyond 32768 would require vmem_limit_bytes on v5e.)
    #  * Clamp so the grid keeps >= ~4 steps when N allows it (megacore
    #    sharding on v7x, pipeline depth elsewhere); never below 128 lanes.
    tn_eff = max(128, min(_round_up(tn, 128), _round_up(pl.cdiv(n, 4), 128)))
    grid = (pl.cdiv(n, tn_eff),)   # ragged tail -> partial last block (masked writes)

    return pl.pallas_call(
        input_param_kernel,
        out_shape=jax.ShapeDtypeStruct((cout, n), odt),
        grid=grid,
        in_specs=[
            pl.BlockSpec((cin, tn_eff), lambda i: (0, i)),
            # Constant block index => B / B_time are fetched once and stay resident.
            pl.BlockSpec((NUM_POS_FOURIER, 3), lambda i: (0, 0)),
            pl.BlockSpec((NUM_TIME_FOURIER, 1), lambda i: (0, 0)),
        ],
        out_specs=pl.BlockSpec((cout, tn_eff), lambda i: (0, i)),
        compiler_params=pltpu.CompilerParams(
            dimension_semantics=("parallel",),   # shard grid across TCs on v7x
        ),
    )(x_cf, B, B_time)


# ----- module-semantics wrapper: (N, Cin) -> (N, Cout) ---------------------------------
@functools.partial(jax.jit, static_argnames=("tn", "out_dtype"))
def input_parametrization(x, B, B_time, *, tn=32768, out_dtype=None):
    """x: (N, Cin) float32, Cin >= 4. B: (12, 3) premultiplied by 2*pi, B_time: (2, 1).
    Returns (N, 32 + extra).

    WARNING (perf): the kernel is HBM-bound and the two transposes here are each
    a full extra HBM read+write (~2x end-to-end cost). Prefer calling
    input_parametrization_cf directly with channels-first data, or fuse the
    output transpose into the consumer's first matmul via dot_general
    dimension_numbers (free on the MXU).
    """
    out_cf = input_parametrization_cf(x.T, B, B_time, tn=tn, out_dtype=out_dtype)
    return out_cf.T


# ----- pure-JAX reference (mirrors the PyTorch forward) -------------------------------
def reference(x, B, B_time):
    x_base = x[:, :NUM_DIRECT]
    x_fourier = x[:, :3]
    x_time = x[:, 3:4]
    x_extra = x[:, NUM_INPUT:]
    f = jnp.dot(x_fourier, B.T, precision=jax.lax.Precision.HIGHEST)
    ft = jnp.dot(x_time, B_time.T, precision=jax.lax.Precision.HIGHEST)
    return jnp.concatenate(
        [x_base, jnp.cos(f), jnp.sin(f), jnp.cos(ft), jnp.sin(ft), x_extra],
        axis=1,
    )


if __name__ == "__main__":
    key = jax.random.PRNGKey(0)
    k_b, k_bt, k_x = jax.random.split(key, 3)

    # Deterministic "buffers" (same shapes/init as the PyTorch __init__, fourier_std>0):
    #   B      = normal(0, std, (12, 3)) * 2*pi     (PREMULTIPLY_2_PI)
    #   B_time = normal(0, std, (2, 1))
    B = jax.random.normal(k_b, (NUM_POS_FOURIER, 3), dtype=jnp.float32) * FOURIER_STD * TWO_PI
    B_time = jax.random.normal(k_bt, (NUM_TIME_FOURIER, 1), dtype=jnp.float32) * FOURIER_STD

    # Small test: 300 samples (deliberately NOT a multiple of 128 to exercise the
    # partial-last-block path), 4 required channels + 2 extra latent channels.
    N, EXTRA = 300, 2
    x = jax.random.normal(k_x, (N, NUM_INPUT + EXTRA), dtype=jnp.float32)

    ref = reference(x, B, B_time)
    COUT = NUM_DIRECT + 2 * NUM_FOURIER_FEATURES + EXTRA

    # 1) channels-first fast path (what real callers should use).
    out_cf = jax.block_until_ready(input_parametrization_cf(x.T, B, B_time))
    assert out_cf.shape == (COUT, N), out_cf.shape
    np.testing.assert_allclose(np.asarray(out_cf.T), np.asarray(ref), rtol=1e-5, atol=1e-5)

    # 2) module-semantics (N, C) wrapper.
    out = jax.block_until_ready(input_parametrization(x, B, B_time))
    assert out.shape == (N, COUT), out.shape
    np.testing.assert_allclose(np.asarray(out), np.asarray(ref), rtol=1e-5, atol=1e-5)

    print("KERNEL_OK")
</pallas_src>

<mosaic_0001>
module attributes {stable_mosaic.version = 11 : i64} {
  func.func @input_param_kernel(%arg0: i32, %arg1: memref<6x128xf32, #tpu.memory_space<vmem>>, %arg2: memref<12x3xf32, #tpu.memory_space<vmem>>, %arg3: memref<2x1xf32, #tpu.memory_space<vmem>>, %arg4: memref<34x128xf32, #tpu.memory_space<vmem>>) attributes {dimension_semantics = [#tpu.dimension_semantics<parallel>], iteration_bounds = array<i64: 3>, scalar_prefetch = 0 : i64, scratch_operands = 0 : i64, tpu.core_type = #tpu.core_type<tc>, window_params = [{transform_indices = @transform_0, window_bounds = array<i64: 6, 128>}, {pipeline_mode = #tpu.pipeline_mode<synchronous>, transform_indices = @transform_1, window_bounds = array<i64: 12, 3>}, {pipeline_mode = #tpu.pipeline_mode<synchronous>, transform_indices = @transform_2, window_bounds = array<i64: 2, 1>}, {transform_indices = @transform_3, window_bounds = array<i64: 34, 128>}]} {
    %c0 = arith.constant 0 : index
    %c0_0 = arith.constant 0 : index
    %0 = vector.load %arg1[%c0, %c0_0] : memref<6x128xf32, #tpu.memory_space<vmem>>, vector<6x128xf32>
    %c0_1 = arith.constant 0 : index
    %c0_2 = arith.constant 0 : index
    %1 = vector.load %arg2[%c0_1, %c0_2] : memref<12x3xf32, #tpu.memory_space<vmem>>, vector<12x3xf32>
    %c0_3 = arith.constant 0 : index
    %c0_4 = arith.constant 0 : index
    %2 = vector.load %arg3[%c0_3, %c0_4] : memref<2x1xf32, #tpu.memory_space<vmem>>, vector<2x1xf32>
    %3 = vector.extract_strided_slice %1 {offsets = [0, 0], sizes = [12, 1], strides = [1, 1]} : vector<12x3xf32> to vector<12x1xf32>
    %4 = vector.extract_strided_slice %0 {offsets = [0, 0], sizes = [1, 128], strides = [1, 1]} : vector<6x128xf32> to vector<1x128xf32>
    %5 = vector.broadcast %3 : vector<12x1xf32> to vector<12x128xf32>
    %6 = vector.broadcast %4 : vector<1x128xf32> to vector<12x128xf32>
    %7 = arith.mulf %5, %6 : vector<12x128xf32>
    %8 = vector.extract_strided_slice %1 {offsets = [0, 1], sizes = [12, 1], strides = [1, 1]} : vector<12x3xf32> to vector<12x1xf32>
    %9 = vector.extract_strided_slice %0 {offsets = [1, 0], sizes = [1, 128], strides = [1, 1]} : vector<6x128xf32> to vector<1x128xf32>
    %10 = vector.broadcast %8 : vector<12x1xf32> to vector<12x128xf32>
    %11 = vector.broadcast %9 : vector<1x128xf32> to vector<12x128xf32>
    %12 = arith.mulf %10, %11 : vector<12x128xf32>
    %13 = arith.addf %7, %12 : vector<12x128xf32>
    %14 = vector.extract_strided_slice %1 {offsets = [0, 2], sizes = [12, 1], strides = [1, 1]} : vector<12x3xf32> to vector<12x1xf32>
    %15 = vector.extract_strided_slice %0 {offsets = [2, 0], sizes = [1, 128], strides = [1, 1]} : vector<6x128xf32> to vector<1x128xf32>
    %16 = vector.broadcast %14 : vector<12x1xf32> to vector<12x128xf32>
    %17 = vector.broadcast %15 : vector<1x128xf32> to vector<12x128xf32>
    %18 = arith.mulf %16, %17 : vector<12x128xf32>
    %19 = arith.addf %13, %18 : vector<12x128xf32>
    %20 = vector.extract_strided_slice %0 {offsets = [3, 0], sizes = [1, 128], strides = [1, 1]} : vector<6x128xf32> to vector<1x128xf32>
    %21 = vector.broadcast %2 : vector<2x1xf32> to vector<2x128xf32>
    %22 = vector.broadcast %20 : vector<1x128xf32> to vector<2x128xf32>
    %23 = arith.mulf %21, %22 : vector<2x128xf32>
    %24 = vector.extract_strided_slice %0 {offsets = [0, 0], sizes = [4, 128], strides = [1, 1]} : vector<6x128xf32> to vector<4x128xf32>
    %25 = math.cos %19 : vector<12x128xf32>
    %26 = math.sin %19 : vector<12x128xf32>
    %27 = math.cos %23 : vector<2x128xf32>
    %28 = math.sin %23 : vector<2x128xf32>
    %29 = vector.extract_strided_slice %0 {offsets = [4, 0], sizes = [2, 128], strides = [1, 1]} : vector<6x128xf32> to vector<2x128xf32>
    %30 = tpu.concatenate %24, %25, %26, %27, %28, %29 in 0 : vector<4x128xf32>, vector<12x128xf32>, vector<12x128xf32>, vector<2x128xf32>, vector<2x128xf32>, vector<2x128xf32> -> vector<34x128xf32>
    %c0_5 = arith.constant 0 : index
    %c0_6 = arith.constant 0 : index
    %31 = vector.load %arg4[%c0_5, %c0_6] : memref<34x128xf32, #tpu.memory_space<vmem>>, vector<34x128xf32>
    tpu.vector_store %arg4[%c0_5, %c0_6], %30 {strides = array<i32>} : memref<34x128xf32, #tpu.memory_space<vmem>>, vector<34x128xf32>,
    return
  }
  func.func @transform_0(%arg0: i32) -> (i32, i32) {
    %c0_i32 = arith.constant 0 : i32
    %c0_i32_0 = arith.constant 0 : i32
    return %c0_i32, %arg0 : i32, i32
  }
  func.func @transform_1(%arg0: i32) -> (i32, i32) {
    %c0_i32 = arith.constant 0 : i32
    %c0_i32_0 = arith.constant 0 : i32
    %c0_i32_1 = arith.constant 0 : i32
    return %c0_i32, %c0_i32_0 : i32, i32
  }
  func.func @transform_2(%arg0: i32) -> (i32, i32) {
    %c0_i32 = arith.constant 0 : i32
    %c0_i32_0 = arith.constant 0 : i32
    %c0_i32_1 = arith.constant 0 : i32
    return %c0_i32, %c0_i32_0 : i32, i32
  }
  func.func @transform_3(%arg0: i32) -> (i32, i32) {
    %c0_i32 = arith.constant 0 : i32
    %c0_i32_0 = arith.constant 0 : i32
    return %c0_i32, %arg0 : i32, i32
  }
}

</mosaic_0001>

<llo_original>
// kernel: input_parametrization_cf.1
$region0: #{input_parametrization_cf.1}
  #allocation0 [shape = 'u32[]', space=smem, size = 0x4, offset = 0x4, fixed_abs, tag = 'smem constant byte address 0x4 - core index']
  #allocation1 [shape = 'u32[144,128]{1,0:T(1,128)}', space=vmem, size = 0x12000, scoped, tag = 'internal scratch']
  %s0 = inlined_call_operand.hbm [shape: f32[6,300], index: 0, kind: input, shape index: {}]
  %s1 = inlined_call_operand.vmem [shape: f32[12,3], index: 1, kind: input, shape index: {}]
  %s2 = inlined_call_operand.vmem [shape: f32[2,1], index: 2, kind: input, shape index: {}]
  %s3 = inlined_call_operand.hbm [shape: f32[34,300], index: 3, kind: output, shape index: {}]
  %s4 = sld [smem:[#allocation0]]
  $region49: #{input_parametrization_cf.1} parent=0
    _
  %s6 = ssub.s32 1, %s4
  %s7 = scalar_select 0, %s6, %s4
  $region1: #{input_parametrization_cf.1} parent=0
    #allocation2 [shape = 'u8[8192]{0}', space=vmem, size = 0x2000, scoped, tag = 'input window, operand 0']
    #allocation3 [shape = 's32[2]{0}', space=sflag, size = 0x8, scoped, tag = 'scoped memory for input_parametrization_cf.1']
    #allocation4 [shape = 's32[2]{0}', space=sflag, size = 0x8, scoped, tag = 'scoped memory for input_parametrization_cf.1']
    #allocation5 [shape = 'u8[40960]{0}', space=vmem, size = 0xa000, scoped, tag = 'output window, operand 0']
    %8 = vsyncpa [#allocation3], 0
    %s9 = scalar_lea.sflag [#allocation3], 1
    %10 = vsyncpa %s9, 0
    %11 = vsyncpa [#allocation4], 0
    %s12 = scalar_lea.sflag [#allocation4], 1
    %13 = vsyncpa %s12, 0
    loop: start=0, step=1, limit=5
    $region2: #{input_parametrization_cf.1} parent=1 // loop_pre_header
      _
    $region3: #{input_parametrization_cf.1} parent=1 // loop_header
      %s15 = sphi 0, %s19
      %p16 = scmp.ge.s32.totalorder %s15, 5
      %s25 = sphi 0, %s27
      %s28 = sphi 0, %s25
      %s29 = sphi 0, %s28
      %s45 = sphi 0, %s29
      %s49 = sphi 0, %s49
      %s51 = sphi 0, %s49
      %s52 = sphi 0, %s51
      %s66 = sphi 0, %s52
      %s70 = sphi 0, %s70
      %s72 = sphi 0, %s70
      %s73 = sphi 0, %s72
      %s87 = sphi 0, %s73
      %s93 = sphi 0, %s95
      %s96 = sphi 0, %s93
      %s97 = sphi 0, %s96
      %s113 = sphi 0, %s97
    $region4: #{input_parametrization_cf.1} parent=1 // loop_header_branch
      %18 = sbr.rel (%p16) target = $region8
    $region5: #{input_parametrization_cf.1} parent=1 // loop_body
      %s20 = ssub.s32 %s15, 1
      %s21 = ssub.s32 %s15, 2
      %s22 = sadd.s32 %s15, 1
      %s23 = ssub.s32 %s15, %s22
      %p24 = scmp.eq.s32.totalorder %s23, 0
      %s26 = sadd.s32 %s25, 1
      %s27 = scalar_select %p24, %s25, %s26
      %p30 = pneg %p24
      %p31 = scmp.eq.s32.totalorder %s15, 2
      %p32 = por %p30, %p31
      %p33 = scmp.ne.s32.totalorder %s25, %s28
      %p34 = scmp.eq.s32.totalorder %s15, 0
      %p35 = por %p33, %p34
      %p36 = scmp.ne.s32.totalorder %s25, %s28
      %p37 = scmp.eq.s32.totalorder %s20, 2
      %p38 = por %p36, %p37
      %p39 = scmp.ne.s32.totalorder %s28, %s29
      %p40 = scmp.eq.s32.totalorder %s20, 0
      %p41 = por %p39, %p40
      %p42 = scmp.ne.s32.totalorder %s28, %s29
      %p43 = scmp.eq.s32.totalorder %s21, 2
      %p44 = por %p42, %p43
      %p46 = scmp.ne.s32.totalorder %s29, %s45
      %p47 = scmp.eq.s32.totalorder %s21, 0
      %p48 = por %p46, %p47
      %s50 = sadd.s32 %s49, 1
      %p53 = scmp.eq.s32.totalorder %s15, 2
      %p54 = scmp.ne.s32.totalorder %s49, %s51
      %p55 = scmp.eq.s32.totalorder %s15, 0
      %p56 = por %p54, %p55
      %p57 = scmp.ne.s32.totalorder %s49, %s51
      %p58 = scmp.eq.s32.totalorder %s20, 2
      %p59 = por %p57, %p58
      %p60 = scmp.ne.s32.totalorder %s51, %s52
      %p61 = scmp.eq.s32.totalorder %s20, 0
      %p62 = por %p60, %p61
      %p63 = scmp.ne.s32.totalorder %s51, %s52
      %p64 = scmp.eq.s32.totalorder %s21, 2
      %p65 = por %p63, %p64
      %p67 = scmp.ne.s32.totalorder %s52, %s66
      %p68 = scmp.eq.s32.totalorder %s21, 0
      %p69 = por %p67, %p68
      %s71 = sadd.s32 %s70, 1
      %p74 = scmp.eq.s32.totalorder %s15, 2
      %p75 = scmp.ne.s32.totalorder %s70, %s72
      %p76 = scmp.eq.s32.totalorder %s15, 0
      %p77 = por %p75, %p76
      %p78 = scmp.ne.s32.totalorder %s70, %s72
      %p79 = scmp.eq.s32.totalorder %s20, 2
      %p80 = por %p78, %p79
      %p81 = scmp.ne.s32.totalorder %s72, %s73
      %p82 = scmp.eq.s32.totalorder %s20, 0
      %p83 = por %p81, %p82
      %p84 = scmp.ne.s32.totalorder %s72, %s73
      %p85 = scmp.eq.s32.totalorder %s21, 2
      %p86 = por %p84, %p85
      %p88 = scmp.ne.s32.totalorder %s73, %s87
      %p89 = scmp.eq.s32.totalorder %s21, 0
      %p90 = por %p88, %p89
      %s91 = ssub.s32 %s15, %s22
      %p92 = scmp.eq.s32.totalorder %s91, 0
      %s94 = sadd.s32 %s93, 1
      %s95 = scalar_select %p92, %s93, %s94
      %p98 = pneg %p92
      %p99 = scmp.eq.s32.totalorder %s15, 2
      %p100 = por %p98, %p99
      %p101 = scmp.ne.s32.totalorder %s93, %s96
      %p102 = scmp.eq.s32.totalorder %s15, 0
      %p103 = por %p101, %p102
      %p104 = scmp.ne.s32.totalorder %s93, %s96
      %p105 = scmp.eq.s32.totalorder %s20, 2
      %p106 = por %p104, %p105
      %p107 = scmp.ne.s32.totalorder %s96, %s97
      %p108 = scmp.eq.s32.totalorder %s20, 0
      %p109 = por %p107, %p108
      %p110 = scmp.ne.s32.totalorder %s96, %s97
      %p111 = scmp.eq.s32.totalorder %s21, 2
      %p112 = por %p110, %p111
      %p114 = scmp.ne.s32.totalorder %s97, %s113
      %p115 = scmp.eq.s32.totalorder %s21, 0
      %p116 = por %p114, %p115
      %p117 = scmp.le.s32.totalorder 1, %s15
      %p118 = scmp.lt.s32.totalorder %s15, 4
      %p119 = pnand %p117, %p118
      %p120 = pneg %p119
      // Predicated region
      $region9: #{input_parametrization_cf.1} parent=5 // pred_check
        _
      $region10: #{input_parametrization_cf.1} parent=5 // pred_check_branch
        %122 = sbr.rel (%p119) target = $region12
      $region11: #{input_parametrization_cf.1} parent=5 // pred_region
        %s123 = ssub.s32 %s15, 1
        // Predicated region
        $region13: #{input_parametrization_cf.1} parent=11 // pred_check
          %p124 = pneg %p62
        $region14: #{input_parametrization_cf.1} parent=11 // pred_check_branch
          %126 = sbr.rel (%p124) target = $region16
        $region15: #{input_parametrization_cf.1} parent=11 // pred_region
          _
        $region16: #{input_parametrization_cf.1} parent=11 // pred_fallthru
          _
        // Predicated region
        $region17: #{input_parametrization_cf.1} parent=11 // pred_check
          %p127 = pneg %p83
        $region18: #{input_parametrization_cf.1} parent=11 // pred_check_branch
          %129 = sbr.rel (%p127) target = $region20
        $region19: #{input_parametrization_cf.1} parent=11 // pred_region
          _
        $region20: #{input_parametrization_cf.1} parent=11 // pred_fallthru
          _
      $region12: #{input_parametrization_cf.1} parent=5 // pred_fallthru
        _
      %p130 = scmp.lt.s32.totalorder %s15, 3
      // Predicated region
      $region21: #{input_parametrization_cf.1} parent=5 // pred_check
        %p131 = pneg %p130
      $region22: #{input_parametrization_cf.1} parent=5 // pred_check_branch
        %133 = sbr.rel (%p131) target = $region24
      $region23: #{input_parametrization_cf.1} parent=5 // pred_region
        // Predicated region
        $region25: #{input_parametrization_cf.1} parent=23 // pred_check
          %p134 = pneg %p35
        $region26: #{input_parametrization_cf.1} parent=23 // pred_check_branch
          %136 = sbr.rel (%p134) target = $region28
        $region27: #{input_parametrization_cf.1} parent=23 // pred_region
          %s137 = sand.u32 %s25, 1
          %s138 = scalar_lea.sflag [#allocation3], %s137
          %s139 = sand.u32 %s25, 1
          %s140 = smul.addr %s139, 8
          %s141 = scalar_lea.vmem [#allocation2], %s140
          %s143 = ssub.s32 128, 128
          %144 = vsyncadd %s138, %s143
          %s145 = smul.addr %s15, 128
          %s146 = scalar_lea.hbm %s0, %s145
          %s148 = sshll.u32 %s141, 4
          %s149 = int_to_ptr.vmem [resolvable:$true] %s148
          %151 = dma.hbm_to_vmem [thread:$0]  %s146, 128, %s149, %s138
        $region28: #{input_parametrization_cf.1} parent=23 // pred_fallthru
          _
      $region24: #{input_parametrization_cf.1} parent=5 // pred_fallthru
        _
      %p152 = scmp.le.s32.totalorder 1, %s15
      %p153 = scmp.lt.s32.totalorder %s15, 4
      %p154 = pnand %p152, %p153
      %p155 = pneg %p154
      // Predicated region
      $region29: #{input_parametrization_cf.1} parent=5 // pred_check
        _
      $region30: #{input_parametrization_cf.1} parent=5 // pred_check_branch
        %157 = sbr.rel (%p154) target = $region32
      $region31: #{input_parametrization_cf.1} parent=5 // pred_region
        %s158 = ssub.s32 %s15, 1
        %s159 = sand.u32 %s28, 1
        %s160 = scalar_lea.sflag [#allocation3], %s159
        %s161 = sand.u32 %s28, 1
        %s162 = smul.addr %s161, 8
        %s163 = scalar_lea.vmem [#allocation2], %s162
        // Predicated region
        $region33: #{input_parametrization_cf.1} parent=31 // pred_check
          %p164 = pneg %p41
        $region34: #{input_parametrization_cf.1} parent=31 // pred_check_branch
          %166 = sbr.rel (%p164) target = $region36
        $region35: #{input_parametrization_cf.1} parent=31 // pred_region
          %167 = dma.done %s160, 128
        $region36: #{input_parametrization_cf.1} parent=31 // pred_fallthru
          _
        %s168 = sand.u32 %s28, 1
        %s169 = scalar_lea.sflag [#allocation3], %s168
        %s170 = sand.u32 %s28, 1
        %s171 = smul.addr %s170, 8
        %s172 = scalar_lea.vmem [#allocation2], %s171
        %p173 = pneg %p41
        %p174 = pneg %p38
        %p175 = pneg %p62
        %p176 = pneg %p59
        %p177 = pneg %p83
        %p178 = pneg %p80
        %p179 = pneg %p109
        %p180 = pneg %p106
        %s181 = sand.u32 %s96, 1
        %s182 = scalar_lea.sflag [#allocation4], %s181
        %s183 = sand.u32 %s96, 1
        %s184 = smul.addr %s183, 40
        %s185 = scalar_lea.vmem [#allocation5], %s184
        %v186 = vld [vmem:[%s163] sm:$0x3f]
        %v187 = vld [vmem:[%s1] sm:$0xff]
        %v188 = vld [vmem:[%s1 + $0x8] sm:$0xf]
        %v189 = vld [vmem:[%s2] sm:$0x3]
        %191 = vset.pattern.permute.xlu0 0
        %192 = vperm.xlu0 %191, %v187
        %v193 = vpop.permute.xlu0 %192
        %196 = vset.pattern.permute.xlu0 0
        %197 = vperm.xlu0 %196, %v188
        %v198 = vpop.permute.xlu0 %197
        %v200 = vlaneseq
        %v201 = vshrl.u32 %v200, 7
        %v202 = vsub.s32 0, %v201
        %v203 = vrot.slane %v186, %v202
        %v204 = vmul.f32 %v193, %v203
        %v205 = vmul.f32 %v198, %v203
        %206 = vset.pattern.permute.xlu0 1
        %207 = vperm.xlu0 %206, %v187
        %v208 = vpop.permute.xlu0 %207
        %210 = vset.pattern.permute.xlu0 1
        %211 = vperm.xlu0 %210, %v188
        %v212 = vpop.permute.xlu0 %211
        %v214 = vlaneseq
        %v215 = vshrl.u32 %v214, 7
        %v216 = vsub.s32 1, %v215
        %v217 = vrot.slane %v186, %v216
        %v218 = vmul.f32 %v208, %v217
        %v219 = vmul.f32 %v212, %v217
        %v220 = vadd.f32 %v204, %v218
        %v221 = vadd.f32 %v205, %v219
        %222 = vset.pattern.permute.xlu0 2
        %223 = vperm.xlu0 %222, %v187
        %v224 = vpop.permute.xlu0 %223
        %226 = vset.pattern.permute.xlu0 2
        %227 = vperm.xlu0 %226, %v188
        %v228 = vpop.permute.xlu0 %227
        %v230 = vlaneseq
        %v231 = vshrl.u32 %v230, 7
        %v232 = vsub.s32 2, %v231
        %v233 = vrot.slane %v186, %v232
        %v234 = vmul.f32 %v224, %v233
        %v235 = vmul.f32 %v228, %v233
        %v236 = vadd.f32 %v220, %v234
        %v237 = vadd.f32 %v221, %v235
        %239 = vset.pattern.permute.xlu0 0
        %240 = vperm.xlu0 %239, %v189
        %v241 = vpop.permute.xlu0 %240
        %v243 = vlaneseq
        %v244 = vshrl.u32 %v243, 7
        %v245 = vsub.s32 3, %v244
        %v246 = vrot.slane %v186, %v245
        %v247 = vmul.f32 %v241, %v246
        %v248 = vand.u32 2147483647, %v236
        %vm249 = vcmp.le.f32.partialorder %v248, 0.7853982
        %vm250 = vcmp.lt.s32.totalorder %v236, 0
        %v251 = vand.u32 %v236, 2139095040
        %v252 = vshrl.u32 %v251, 23
        %v253 = vsub.s32 %v252, 127
        %v254 = vand.u32 2147483647, %v236
        %v255 = vand.u32 %v254, 8388607
        %v256 = vor.u32 %v255, 8388608
        %v257 = vsub.s32 0, %v256
        %v258 = vadd.s32 %v253, 1
        %vm259 = vcmp.gt.s32.totalorder %v258, 0
        %v260 = vsel %vm259, %v258, 0
        %v261 = vshrl.u32 %v260, 5
        %v262 = vand.u32 %v260, 31
        %v263 = vsub.s32 32, %v262
        %v264 = vshrl.u32 683565275, %v263
        %v265 = vshll.u32 683565275, %v262
        %v266 = vshrl.u32 2475754826, %v263
        %v267 = vor.u32 %v265, %v266
        %v268 = vshll.u32 2475754826, %v262
        %v269 = vshrl.u32 2131351028, %v263
        %v270 = vor.u32 %v268, %v269
        %v271 = vshll.u32 2131351028, %v262
        %v272 = vshrl.u32 2102212464, %v263
        %v273 = vor.u32 %v271, %v272
        %v274 = vshll.u32 2102212464, %v262
        %v275 = vshrl.u32 920167782, %v263
        %v276 = vor.u32 %v274, %v275
        %v277 = vshll.u32 920167782, %v262
        %v278 = vshrl.u32 1326507024, %v263
        %v279 = vor.u32 %v277, %v278
        %vm280 = vcmp.lt.s32.totalorder %v261, 1
        %vm281 = vcmp.lt.s32.totalorder %v261, 2
        %vm282 = vcmp.lt.s32.totalorder %v261, 3
        %vm283 = vcmp.lt.s32.totalorder %v261, 4
        %v284 = vsel %vm280, %v264, %v267
        %v285 = vsel %vm283, %v273, 2102212464
        %v286 = vsel %vm282, %v270, %v285
        %v287 = vsel %vm281, %v284, %v286
        %v288 = vsel %vm280, %v267, %v270
        %v289 = vsel %vm283, %v276, 920167782
        %v290 = vsel %vm282, %v273, %v289
        %v291 = vsel %vm281, %v288, %v290
        %v292 = vsel %vm280, %v270, %v273
        %v293 = vsel %vm283, %v279, 1326507024
        %v294 = vsel %vm282, %v276, %v293
        %v295 = vsel %vm281, %v292, %v294
        %v296 = vshll.u32 %v256, 8
        %v297 = vmul.u32.u64.compose %v296, %v295
        %v298 = vextract.low.u32 %v297
        %v299 = vextract.high.u32 %v297
        %v300 = vmul.u32.u64.compose %v296, %v291
        %v301 = vextract.low.u32 %v300
        %v302 = vextract.high.u32 %v300
        %v303 = vmul.u32 %v296, %v287
        %v304 = vadd.s32 %v299, %v301
        %vm305 = vc.u32 %v299, %v301
        %v306 = vadd.s32 %v302, 1
        %v307 = vsel %vm305, %v306, %v302
        %v308 = vadd.s32 %v303, %v307
        %v309 = vadd.s32 %v308, 536870912
        %v310 = vshrl.u32 %v309, 30
        %v311 = vshll.u32 %v310, 30
        %v312 = vsub.s32 %v308, %v311
        %vm313 = vcmp.lt.s32.totalorder %v312, 0
        %v314 = vsub.s32 0, %v312
        %v315 = vsel %vm313, %v314, %v312
        %v316 = vclz %v315
        %v317 = vsub.s32 %v316, 2
        %vm318 = vcmp.gt.s32.totalorder 0, %v317
        %v319 = vsel %vm318, 0, %v317
        %v320 = vsub.s32 32, %v319
        %v321 = vshll.u32 %v312, %v319
        %v322 = vshrl.u32 %v304, %v320
        %v323 = vor.u32 %v321, %v322
        %v324 = vsub.s32 4294967266, %v319
        %v325 = vadd.s32 %v324, 127
        %v326 = vshll.u32 %v325, 23
        %v327 = vor.u32 4788187, %v326
        %v328 = vand.u32 2147483647, %v327
        %v330 = vcvt.s32.f32 %v323
        %v331 = vmul.f32 %v330, %v328
        %v332 = vxor.u32 %v331, 2147483648
        %v333 = vsel %vm250, %v332, %v331
        %v334 = vsub.s32 4, %v310
        %v335 = vsel %vm250, %v334, %v310
        %v336 = vsel %vm249, %v236, %v333
        %v337 = vsel %vm249, 0, %v335
        %v338 = vcosq.f32.pop %v336
        %v339 = vsinq.f32.pop %v336
        %vm340 = vweird.f32 %v236
        %v341 = vand.u32 %v337, 3
        %vm342 = vcmp.lt.s32.totalorder %v341, 2
        %vm343 = vcmp.eq.s32.totalorder %v341, 0
        %v344 = vxor.u32 %v339, 2147483648
        %v345 = vsel %vm343, %v338, %v344
        %vm346 = vcmp.eq.s32.totalorder %v341, 2
        %v347 = vxor.u32 %v338, 2147483648
        %v348 = vsel %vm346, %v347, %v339
        %v349 = vsel %vm342, %v345, %v348
        %v350 = vsel %vm340, nan, %v349
        %v351 = vand.u32 2147483647, %v237
        %vm352 = vcmp.le.f32.partialorder %v351, 0.7853982
        %vm353 = vcmp.lt.s32.totalorder %v237, 0
        %v354 = vand.u32 %v237, 2139095040
        %v355 = vshrl.u32 %v354, 23
        %v356 = vsub.s32 %v355, 127
        %v357 = vand.u32 2147483647, %v237
        %v358 = vand.u32 %v357, 8388607
        %v359 = vor.u32 %v358, 8388608
        %v360 = vsub.s32 0, %v359
        %v361 = vadd.s32 %v356, 1
        %vm362 = vcmp.gt.s32.totalorder %v361, 0
        %v363 = vsel %vm362, %v361, 0
        %v364 = vshrl.u32 %v363, 5
        %v365 = vand.u32 %v363, 31
        %v366 = vsub.s32 32, %v365
        %v367 = vshrl.u32 683565275, %v366
        %v368 = vshll.u32 683565275, %v365
        %v369 = vshrl.u32 2475754826, %v366
        %v370 = vor.u32 %v368, %v369
        %v371 = vshll.u32 2475754826, %v365
        %v372 = vshrl.u32 2131351028, %v366
        %v373 = vor.u32 %v371, %v372
        %v374 = vshll.u32 2131351028, %v365
        %v375 = vshrl.u32 2102212464, %v366
        %v376 = vor.u32 %v374, %v375
        %v377 = vshll.u32 2102212464, %v365
        %v378 = vshrl.u32 920167782, %v366
        %v379 = vor.u32 %v377, %v378
        %v380 = vshll.u32 920167782, %v365
        %v381 = vshrl.u32 1326507024, %v366
        %v382 = vor.u32 %v380, %v381
        %vm383 = vcmp.lt.s32.totalorder %v364, 1
        %vm384 = vcmp.lt.s32.totalorder %v364, 2
        %vm385 = vcmp.lt.s32.totalorder %v364, 3
        %vm386 = vcmp.lt.s32.totalorder %v364, 4
        %v387 = vsel %vm383, %v367, %v370
        %v388 = vsel %vm386, %v376, 2102212464
        %v389 = vsel %vm385, %v373, %v388
        %v390 = vsel %vm384, %v387, %v389
        %v391 = vsel %vm383, %v370, %v373
        %v392 = vsel %vm386, %v379, 920167782
        %v393 = vsel %vm385, %v376, %v392
        %v394 = vsel %vm384, %v391, %v393
        %v395 = vsel %vm383, %v373, %v376
        %v396 = vsel %vm386, %v382, 1326507024
        %v397 = vsel %vm385, %v379, %v396
        %v398 = vsel %vm384, %v395, %v397
        %v399 = vshll.u32 %v359, 8
        %v400 = vmul.u32.u64.compose %v399, %v398
        %v401 = vextract.low.u32 %v400
        %v402 = vextract.high.u32 %v400
        %v403 = vmul.u32.u64.compose %v399, %v394
        %v404 = vextract.low.u32 %v403
        %v405 = vextract.high.u32 %v403
        %v406 = vmul.u32 %v399, %v390
        %v407 = vadd.s32 %v402, %v404
        %vm408 = vc.u32 %v402, %v404
        %v409 = vadd.s32 %v405, 1
        %v410 = vsel %vm408, %v409, %v405
        %v411 = vadd.s32 %v406, %v410
        %v412 = vadd.s32 %v411, 536870912
        %v413 = vshrl.u32 %v412, 30
        %v414 = vshll.u32 %v413, 30
        %v415 = vsub.s32 %v411, %v414
        %vm416 = vcmp.lt.s32.totalorder %v415, 0
        %v417 = vsub.s32 0, %v415
        %v418 = vsel %vm416, %v417, %v415
        %v419 = vclz %v418
        %v420 = vsub.s32 %v419, 2
        %vm421 = vcmp.gt.s32.totalorder 0, %v420
        %v422 = vsel %vm421, 0, %v420
        %v423 = vsub.s32 32, %v422
        %v424 = vshll.u32 %v415, %v422
        %v425 = vshrl.u32 %v407, %v423
        %v426 = vor.u32 %v424, %v425
        %v427 = vsub.s32 4294967266, %v422
        %v428 = vadd.s32 %v427, 127
        %v429 = vshll.u32 %v428, 23
        %v430 = vor.u32 4788187, %v429
        %v431 = vand.u32 2147483647, %v430
        %v433 = vcvt.s32.f32 %v426
        %v434 = vmul.f32 %v433, %v431
        %v435 = vxor.u32 %v434, 2147483648
        %v436 = vsel %vm353, %v435, %v434
        %v437 = vsub.s32 4, %v413
        %v438 = vsel %vm353, %v437, %v413
        %v439 = vsel %vm352, %v237, %v436
        %v440 = vsel %vm352, 0, %v438
        %v441 = vcosq.f32.pop %v439
        %v442 = vsinq.f32.pop %v439
        %vm443 = vweird.f32 %v237
        %v444 = vand.u32 %v440, 3
        %vm445 = vcmp.lt.s32.totalorder %v444, 2
        %vm446 = vcmp.eq.s32.totalorder %v444, 0
        %v447 = vxor.u32 %v442, 2147483648
        %v448 = vsel %vm446, %v441, %v447
        %vm449 = vcmp.eq.s32.totalorder %v444, 2
        %v450 = vxor.u32 %v441, 2147483648
        %v451 = vsel %vm449, %v450, %v442
        %v452 = vsel %vm445, %v448, %v451
        %v453 = vsel %vm443, nan, %v452
        %v454 = vand.u32 2147483647, %v236
        %vm455 = vcmp.le.f32.partialorder %v454, 0.7853982
        %vm456 = vcmp.lt.s32.totalorder %v236, 0
        %v457 = vand.u32 %v236, 2139095040
        %v458 = vshrl.u32 %v457, 23
        %v459 = vsub.s32 %v458, 127
        %v460 = vand.u32 2147483647, %v236
        %v461 = vand.u32 %v460, 8388607
        %v462 = vor.u32 %v461, 8388608
        %v463 = vsub.s32 0, %v462
        %v464 = vadd.s32 %v459, 1
        %vm465 = vcmp.gt.s32.totalorder %v464, 0
        %v466 = vsel %vm465, %v464, 0
        %v467 = vshrl.u32 %v466, 5
        %v468 = vand.u32 %v466, 31
        %v469 = vsub.s32 32, %v468
        %v470 = vshrl.u32 683565275, %v469
        %v471 = vshll.u32 683565275, %v468
        %v472 = vshrl.u32 2475754826, %v469
        %v473 = vor.u32 %v471, %v472
        %v474 = vshll.u32 2475754826, %v468
        %v475 = vshrl.u32 2131351028, %v469
        %v476 = vor.u32 %v474, %v475
        %v477 = vshll.u32 2131351028, %v468
        %v478 = vshrl.u32 2102212464, %v469
        %v479 = vor.u32 %v477, %v478
        %v480 = vshll.u32 2102212464, %v468
        %v481 = vshrl.u32 920167782, %v469
        %v482 = vor.u32 %v480, %v481
        %v483 = vshll.u32 920167782, %v468
        %v484 = vshrl.u32 1326507024, %v469
        %v485 = vor.u32 %v483, %v484
        %vm486 = vcmp.lt.s32.totalorder %v467, 1
        %vm487 = vcmp.lt.s32.totalorder %v467, 2
        %vm488 = vcmp.lt.s32.totalorder %v467, 3
        %vm489 = vcmp.lt.s32.totalorder %v467, 4
        %v490 = vsel %vm486, %v470, %v473
        %v491 = vsel %vm489, %v479, 2102212464
        %v492 = vsel %vm488, %v476, %v491
        %v493 = vsel %vm487, %v490, %v492
        %v494 = vsel %vm486, %v473, %v476
        %v495 = vsel %vm489, %v482, 920167782
        %v496 = vsel %vm488, %v479, %v495
        %v497 = vsel %vm487, %v494, %v496
        %v498 = vsel %vm486, %v476, %v479
        %v499 = vsel %vm489, %v485, 1326507024
        %v500 = vsel %vm488, %v482, %v499
        %v501 = vsel %vm487, %v498, %v500
        %v502 = vshll.u32 %v462, 8
        %v503 = vmul.u32.u64.compose %v502, %v501
        %v504 = vextract.low.u32 %v503
        %v505 = vextract.high.u32 %v503
        %v506 = vmul.u32.u64.compose %v502, %v497
        %v507 = vextract.low.u32 %v506
        %v508 = vextract.high.u32 %v506
        %v509 = vmul.u32 %v502, %v493
        %v510 = vadd.s32 %v505, %v507
        %vm511 = vc.u32 %v505, %v507
        %v512 = vadd.s32 %v508, 1
        %v513 = vsel %vm511, %v512, %v508
        %v514 = vadd.s32 %v509, %v513
        %v515 = vadd.s32 %v514, 536870912
        %v516 = vshrl.u32 %v515, 30
        %v517 = vshll.u32 %v516, 30
        %v518 = vsub.s32 %v514, %v517
        %vm519 = vcmp.lt.s32.totalorder %v518, 0
        %v520 = vsub.s32 0, %v518
        %v521 = vsel %vm519, %v520, %v518
        %v522 = vclz %v521
        %v523 = vsub.s32 %v522, 2
        %vm524 = vcmp.gt.s32.totalorder 0, %v523
        %v525 = vsel %vm524, 0, %v523
        %v526 = vsub.s32 32, %v525
        %v527 = vshll.u32 %v518, %v525
        %v528 = vshrl.u32 %v510, %v526
        %v529 = vor.u32 %v527, %v528
        %v530 = vsub.s32 4294967266, %v525
        %v531 = vadd.s32 %v530, 127
        %v532 = vshll.u32 %v531, 23
        %v533 = vor.u32 4788187, %v532
        %v534 = vand.u32 2147483647, %v533
        %v536 = vcvt.s32.f32 %v529
        %v537 = vmul.f32 %v536, %v534
        %v538 = vxor.u32 %v537, 2147483648
        %v539 = vsel %vm456, %v538, %v537
        %v540 = vsub.s32 4, %v516
        %v541 = vsel %vm456, %v540, %v516
        %v542 = vsel %vm455, %v236, %v539
        %v543 = vsel %vm455, 0, %v541
        %v544 = vcosq.f32.pop %v542
        %v545 = vsinq.f32.pop %v542
        %vm546 = vweird.f32 %v236
        %v547 = vadd.s32 %v543, 3
        %v548 = vand.u32 %v547, 3
        %vm549 = vcmp.lt.s32.totalorder %v548, 2
        %vm550 = vcmp.eq.s32.totalorder %v548, 0
        %v551 = vxor.u32 %v545, 2147483648
        %v552 = vsel %vm550, %v544, %v551
        %vm553 = vcmp.eq.s32.totalorder %v548, 2
        %v554 = vxor.u32 %v544, 2147483648
        %v555 = vsel %vm553, %v554, %v545
        %v556 = vsel %vm549, %v552, %v555
        %v557 = vsel %vm546, nan, %v556
        %v558 = vand.u32 2147483647, %v237
        %vm559 = vcmp.le.f32.partialorder %v558, 0.7853982
        %vm560 = vcmp.lt.s32.totalorder %v237, 0
        %v561 = vand.u32 %v237, 2139095040
        %v562 = vshrl.u32 %v561, 23
        %v563 = vsub.s32 %v562, 127
        %v564 = vand.u32 2147483647, %v237
        %v565 = vand.u32 %v564, 8388607
        %v566 = vor.u32 %v565, 8388608
        %v567 = vsub.s32 0, %v566
        %v568 = vadd.s32 %v563, 1
        %vm569 = vcmp.gt.s32.totalorder %v568, 0
        %v570 = vsel %vm569, %v568, 0
        %v571 = vshrl.u32 %v570, 5
        %v572 = vand.u32 %v570, 31
        %v573 = vsub.s32 32, %v572
        %v574 = vshrl.u32 683565275, %v573
        %v575 = vshll.u32 683565275, %v572
        %v576 = vshrl.u32 2475754826, %v573
        %v577 = vor.u32 %v575, %v576
        %v578 = vshll.u32 2475754826, %v572
        %v579 = vshrl.u32 2131351028, %v573
        %v580 = vor.u32 %v578, %v579
        %v581 = vshll.u32 2131351028, %v572
        %v582 = vshrl.u32 2102212464, %v573
        %v583 = vor.u32 %v581, %v582
        %v584 = vshll.u32 2102212464, %v572
        %v585 = vshrl.u32 920167782, %v573
        %v586 = vor.u32 %v584, %v585
        %v587 = vshll.u32 920167782, %v572
        %v588 = vshrl.u32 1326507024, %v573
        %v589 = vor.u32 %v587, %v588
        %vm590 = vcmp.lt.s32.totalorder %v571, 1
        %vm591 = vcmp.lt.s32.totalorder %v571, 2
        %vm592 = vcmp.lt.s32.totalorder %v571, 3
        %vm593 = vcmp.lt.s32.totalorder %v571, 4
        %v594 = vsel %vm590, %v574, %v577
        %v595 = vsel %vm593, %v583, 2102212464
        %v596 = vsel %vm592, %v580, %v595
        %v597 = vsel %vm591, %v594, %v596
        %v598 = vsel %vm590, %v577, %v580
        %v599 = vsel %vm593, %v586, 920167782
        %v600 = vsel %vm592, %v583, %v599
        %v601 = vsel %vm591, %v598, %v600
        %v602 = vsel %vm590, %v580, %v583
        %v603 = vsel %vm593, %v589, 1326507024
        %v604 = vsel %vm592, %v586, %v603
        %v605 = vsel %vm591, %v602, %v604
        %v606 = vshll.u32 %v566, 8
        %v607 = vmul.u32.u64.compose %v606, %v605
        %v608 = vextract.low.u32 %v607
        %v609 = vextract.high.u32 %v607
        %v610 = vmul.u32.u64.compose %v606, %v601
        %v611 = vextract.low.u32 %v610
        %v612 = vextract.high.u32 %v610
        %v613 = vmul.u32 %v606, %v597
        %v614 = vadd.s32 %v609, %v611
        %vm615 = vc.u32 %v609, %v611
        %v616 = vadd.s32 %v612, 1
        %v617 = vsel %vm615, %v616, %v612
        %v618 = vadd.s32 %v613, %v617
        %v619 = vadd.s32 %v618, 536870912
        %v620 = vshrl.u32 %v619, 30
        %v621 = vshll.u32 %v620, 30
        %v622 = vsub.s32 %v618, %v621
        %vm623 = vcmp.lt.s32.totalorder %v622, 0
        %v624 = vsub.s32 0, %v622
        %v625 = vsel %vm623, %v624, %v622
        %v626 = vclz %v625
        %v627 = vsub.s32 %v626, 2
        %vm628 = vcmp.gt.s32.totalorder 0, %v627
        %v629 = vsel %vm628, 0, %v627
        %v630 = vsub.s32 32, %v629
        %v631 = vshll.u32 %v622, %v629
        %v632 = vshrl.u32 %v614, %v630
        %v633 = vor.u32 %v631, %v632
        %v634 = vsub.s32 4294967266, %v629
        %v635 = vadd.s32 %v634, 127
        %v636 = vshll.u32 %v635, 23
        %v637 = vor.u32 4788187, %v636
        %v638 = vand.u32 2147483647, %v637
        %v640 = vcvt.s32.f32 %v633
        %v641 = vmul.f32 %v640, %v638
        %v642 = vxor.u32 %v641, 2147483648
        %v643 = vsel %vm560, %v642, %v641
        %v644 = vsub.s32 4, %v620
        %v645 = vsel %vm560, %v644, %v620
        %v646 = vsel %vm559, %v237, %v643
        %v647 = vsel %vm559, 0, %v645
        %v648 = vcosq.f32.pop %v646
        %v649 = vsinq.f32.pop %v646
        %vm650 = vweird.f32 %v237
        %v651 = vadd.s32 %v647, 3
        %v652 = vand.u32 %v651, 3
        %vm653 = vcmp.lt.s32.totalorder %v652, 2
        %vm654 = vcmp.eq.s32.totalorder %v652, 0
        %v655 = vxor.u32 %v649, 2147483648
        %v656 = vsel %vm654, %v648, %v655
        %vm657 = vcmp.eq.s32.totalorder %v652, 2
        %v658 = vxor.u32 %v648, 2147483648
        %v659 = vsel %vm657, %v658, %v649
        %v660 = vsel %vm653, %v656, %v659
        %v661 = vsel %vm650, nan, %v660
        %v662 = vand.u32 2147483647, %v247
        %vm663 = vcmp.le.f32.partialorder %v662, 0.7853982
        %vm664 = vcmp.lt.s32.totalorder %v247, 0
        %v665 = vand.u32 %v247, 2139095040
        %v666 = vshrl.u32 %v665, 23
        %v667 = vsub.s32 %v666, 127
        %v668 = vand.u32 2147483647, %v247
        %v669 = vand.u32 %v668, 8388607
        %v670 = vor.u32 %v669, 8388608
        %v671 = vsub.s32 0, %v670
        %v672 = vadd.s32 %v667, 1
        %vm673 = vcmp.gt.s32.totalorder %v672, 0
        %v674 = vsel %vm673, %v672, 0
        %v675 = vshrl.u32 %v674, 5
        %v676 = vand.u32 %v674, 31
        %v677 = vsub.s32 32, %v676
        %v678 = vshrl.u32 683565275, %v677
        %v679 = vshll.u32 683565275, %v676
        %v680 = vshrl.u32 2475754826, %v677
        %v681 = vor.u32 %v679, %v680
        %v682 = vshll.u32 2475754826, %v676
        %v683 = vshrl.u32 2131351028, %v677
        %v684 = vor.u32 %v682, %v683
        %v685 = vshll.u32 2131351028, %v676
        %v686 = vshrl.u32 2102212464, %v677
        %v687 = vor.u32 %v685, %v686
        %v688 = vshll.u32 2102212464, %v676
        %v689 = vshrl.u32 920167782, %v677
        %v690 = vor.u32 %v688, %v689
        %v691 = vshll.u32 920167782, %v676
        %v692 = vshrl.u32 1326507024, %v677
        %v693 = vor.u32 %v691, %v692
        %vm694 = vcmp.lt.s32.totalorder %v675, 1
        %vm695 = vcmp.lt.s32.totalorder %v675, 2
        %vm696 = vcmp.lt.s32.totalorder %v675, 3
        %vm697 = vcmp.lt.s32.totalorder %v675, 4
        %v698 = vsel %vm694, %v678, %v681
        %v699 = vsel %vm697, %v687, 2102212464
        %v700 = vsel %vm696, %v684, %v699
        %v701 = vsel %vm695, %v698, %v700
        %v702 = vsel %vm694, %v681, %v684
        %v703 = vsel %vm697, %v690, 920167782
        %v704 = vsel %vm696, %v687, %v703
        %v705 = vsel %vm695, %v702, %v704
        %v706 = vsel %vm694, %v684, %v687
        %v707 = vsel %vm697, %v693, 1326507024
        %v708 = vsel %vm696, %v690, %v707
        %v709 = vsel %vm695, %v706, %v708
        %v710 = vshll.u32 %v670, 8
        %v711 = vmul.u32.u64.compose %v710, %v709
        %v712 = vextract.low.u32 %v711
        %v713 = vextract.high.u32 %v711
        %v714 = vmul.u32.u64.compose %v710, %v705
        %v715 = vextract.low.u32 %v714
        %v716 = vextract.high.u32 %v714
        %v717 = vmul.u32 %v710, %v701
        %v718 = vadd.s32 %v713, %v715
        %vm719 = vc.u32 %v713, %v715
        %v720 = vadd.s32 %v716, 1
        %v721 = vsel %vm719, %v720, %v716
        %v722 = vadd.s32 %v717, %v721
        %v723 = vadd.s32 %v722, 536870912
        %v724 = vshrl.u32 %v723, 30
        %v725 = vshll.u32 %v724, 30
        %v726 = vsub.s32 %v722, %v725
        %vm727 = vcmp.lt.s32.totalorder %v726, 0
        %v728 = vsub.s32 0, %v726
        %v729 = vsel %vm727, %v728, %v726
        %v730 = vclz %v729
        %v731 = vsub.s32 %v730, 2
        %vm732 = vcmp.gt.s32.totalorder 0, %v731
        %v733 = vsel %vm732, 0, %v731
        %v734 = vsub.s32 32, %v733
        %v735 = vshll.u32 %v726, %v733
        %v736 = vshrl.u32 %v718, %v734
        %v737 = vor.u32 %v735, %v736
        %v738 = vsub.s32 4294967266, %v733
        %v739 = vadd.s32 %v738, 127
        %v740 = vshll.u32 %v739, 23
        %v741 = vor.u32 4788187, %v740
        %v742 = vand.u32 2147483647, %v741
        %v744 = vcvt.s32.f32 %v737
        %v745 = vmul.f32 %v744, %v742
        %v746 = vxor.u32 %v745, 2147483648
        %v747 = vsel %vm664, %v746, %v745
        %v748 = vsub.s32 4, %v724
        %v749 = vsel %vm664, %v748, %v724
        %v750 = vsel %vm663, %v247, %v747
        %v751 = vsel %vm663, 0, %v749
        %v752 = vcosq.f32.pop %v750
        %v753 = vsinq.f32.pop %v750
        %vm754 = vweird.f32 %v247
        %v755 = vand.u32 %v751, 3
        %vm756 = vcmp.lt.s32.totalorder %v755, 2
        %vm757 = vcmp.eq.s32.totalorder %v755, 0
        %v758 = vxor.u32 %v753, 2147483648
        %v759 = vsel %vm757, %v752, %v758
        %vm760 = vcmp.eq.s32.totalorder %v755, 2
        %v761 = vxor.u32 %v752, 2147483648
        %v762 = vsel %vm760, %v761, %v753
        %v763 = vsel %vm756, %v759, %v762
        %v764 = vsel %vm754, nan, %v763
        %v765 = vand.u32 2147483647, %v247
        %vm766 = vcmp.le.f32.partialorder %v765, 0.7853982
        %vm767 = vcmp.lt.s32.totalorder %v247, 0
        %v768 = vand.u32 %v247, 2139095040
        %v769 = vshrl.u32 %v768, 23
        %v770 = vsub.s32 %v769, 127
        %v771 = vand.u32 2147483647, %v247
        %v772 = vand.u32 %v771, 8388607
        %v773 = vor.u32 %v772, 8388608
        %v774 = vsub.s32 0, %v773
        %v775 = vadd.s32 %v770, 1
        %vm776 = vcmp.gt.s32.totalorder %v775, 0
        %v777 = vsel %vm776, %v775, 0
        %v778 = vshrl.u32 %v777, 5
        %v779 = vand.u32 %v777, 31
        %v780 = vsub.s32 32, %v779
        %v781 = vshrl.u32 683565275, %v780
        %v782 = vshll.u32 683565275, %v779
        %v783 = vshrl.u32 2475754826, %v780
        %v784 = vor.u32 %v782, %v783
        %v785 = vshll.u32 2475754826, %v779
        %v786 = vshrl.u32 2131351028, %v780
        %v787 = vor.u32 %v785, %v786
        %v788 = vshll.u32 2131351028, %v779
        %v789 = vshrl.u32 2102212464, %v780
        %v790 = vor.u32 %v788, %v789
        %v791 = vshll.u32 2102212464, %v779
        %v792 = vshrl.u32 920167782, %v780
        %v793 = vor.u32 %v791, %v792
        %v794 = vshll.u32 920167782, %v779
        %v795 = vshrl.u32 1326507024, %v780
        %v796 = vor.u32 %v794, %v795
        %vm797 = vcmp.lt.s32.totalorder %v778, 1
        %vm798 = vcmp.lt.s32.totalorder %v778, 2
        %vm799 = vcmp.lt.s32.totalorder %v778, 3
        %vm800 = vcmp.lt.s32.totalorder %v778, 4
        %v801 = vsel %vm797, %v781, %v784
        %v802 = vsel %vm800, %v790, 2102212464
        %v803 = vsel %vm799, %v787, %v802
        %v804 = vsel %vm798, %v801, %v803
        %v805 = vsel %vm797, %v784, %v787
        %v806 = vsel %vm800, %v793, 920167782
        %v807 = vsel %vm799, %v790, %v806
        %v808 = vsel %vm798, %v805, %v807
        %v809 = vsel %vm797, %v787, %v790
        %v810 = vsel %vm800, %v796, 1326507024
        %v811 = vsel %vm799, %v793, %v810
        %v812 = vsel %vm798, %v809, %v811
        %v813 = vshll.u32 %v773, 8
        %v814 = vmul.u32.u64.compose %v813, %v812
        %v815 = vextract.low.u32 %v814
        %v816 = vextract.high.u32 %v814
        %v817 = vmul.u32.u64.compose %v813, %v808
        %v818 = vextract.low.u32 %v817
        %v819 = vextract.high.u32 %v817
        %v820 = vmul.u32 %v813, %v804
        %v821 = vadd.s32 %v816, %v818
        %vm822 = vc.u32 %v816, %v818
        %v823 = vadd.s32 %v819, 1
        %v824 = vsel %vm822, %v823, %v819
        %v825 = vadd.s32 %v820, %v824
        %v826 = vadd.s32 %v825, 536870912
        %v827 = vshrl.u32 %v826, 30
        %v828 = vshll.u32 %v827, 30
        %v829 = vsub.s32 %v825, %v828
        %vm830 = vcmp.lt.s32.totalorder %v829, 0
        %v831 = vsub.s32 0, %v829
        %v832 = vsel %vm830, %v831, %v829
        %v833 = vclz %v832
        %v834 = vsub.s32 %v833, 2
        %vm835 = vcmp.gt.s32.totalorder 0, %v834
        %v836 = vsel %vm835, 0, %v834
        %v837 = vsub.s32 32, %v836
        %v838 = vshll.u32 %v829, %v836
        %v839 = vshrl.u32 %v821, %v837
        %v840 = vor.u32 %v838, %v839
        %v841 = vsub.s32 4294967266, %v836
        %v842 = vadd.s32 %v841, 127
        %v843 = vshll.u32 %v842, 23
        %v844 = vor.u32 4788187, %v843
        %v845 = vand.u32 2147483647, %v844
        %v847 = vcvt.s32.f32 %v840
        %v848 = vmul.f32 %v847, %v845
        %v849 = vxor.u32 %v848, 2147483648
        %v850 = vsel %vm767, %v849, %v848
        %v851 = vsub.s32 4, %v827
        %v852 = vsel %vm767, %v851, %v827
        %v853 = vsel %vm766, %v247, %v850
        %v854 = vsel %vm766, 0, %v852
        %v855 = vcosq.f32.pop %v853
        %v856 = vsinq.f32.pop %v853
        %vm857 = vweird.f32 %v247
        %v858 = vadd.s32 %v854, 3
        %v859 = vand.u32 %v858, 3
        %vm860 = vcmp.lt.s32.totalorder %v859, 2
        %vm861 = vcmp.eq.s32.totalorder %v859, 0
        %v862 = vxor.u32 %v856, 2147483648
        %v863 = vsel %vm861, %v855, %v862
        %vm864 = vcmp.eq.s32.totalorder %v859, 2
        %v865 = vxor.u32 %v855, 2147483648
        %v866 = vsel %vm864, %v865, %v856
        %v867 = vsel %vm860, %v863, %v866
        %v868 = vsel %vm857, nan, %v867
        %vm871 = vcmask 1043456
        %v872 = vrot.slane %v350, 4
        %v873 = vrot.slane %v453, 4
        %v874 = vsel %vm871, %v872, %v873
        %v878 = vrot.slane %v764, 4
        %v881 = vrot.slane %v868, 2
        %v884 = vrot.slane %v186, 4
        %v886 = vsel %vm871, %v186, %v872
        %v887 = vsel %vm871, %v661, %v878
        %vm888 = vcmask 1045504
        %v889 = vsel %vm888, %v887, %v881
        %890 = vst [vmem:[%s185] sm:$0xff] %v886
        %891 = vst [vmem:[%s185 + $0x8] sm:$0xff] %v874
        %892 = vst [vmem:[%s185 + $0x10] sm:$0xff] %v557
        %893 = vst [vmem:[%s185 + $0x18] sm:$0xff] %v889
        %894 = vst [vmem:[%s185 + $0x20] sm:$0x3] %v884
        %s895 = sand.u32 %s96, 1
        %s896 = scalar_lea.sflag [#allocation4], %s895
        %s897 = sand.u32 %s96, 1
        %s898 = smul.addr %s897, 40
        %s899 = scalar_lea.vmem [#allocation5], %s898
        // Predicated region
        $region37: #{input_parametrization_cf.1} parent=31 // pred_check
          %p900 = pneg %p106
        $region38: #{input_parametrization_cf.1} parent=31 // pred_check_branch
          %902 = sbr.rel (%p900) target = $region40
        $region39: #{input_parametrization_cf.1} parent=31 // pred_region
          %s904 = ssub.s32 640, 640
          %905 = vsyncadd %s896, %s904
          %s906 = smul.addr %s20, 128
          %s907 = scalar_lea.hbm %s3, %s906
          %s908 = sshll.u32 %s899, 4
          %s909 = int_to_ptr.vmem [resolvable:$true] %s908
          %914 = dma.vmem_to_hbm [thread:$0]  %s909, 640, %s907, %s896, 128, 384, 8
        $region40: #{input_parametrization_cf.1} parent=31 // pred_fallthru
          _
      $region32: #{input_parametrization_cf.1} parent=5 // pred_fallthru
        _
      %p915 = scmp.le.s32.totalorder 2, %s15
      // Predicated region
      $region41: #{input_parametrization_cf.1} parent=5 // pred_check
        %p916 = pneg %p915
      $region42: #{input_parametrization_cf.1} parent=5 // pred_check_branch
        %918 = sbr.rel (%p916) target = $region44
      $region43: #{input_parametrization_cf.1} parent=5 // pred_region
        %s919 = ssub.s32 %s15, 2
        // Predicated region
        $region45: #{input_parametrization_cf.1} parent=43 // pred_check
          %p920 = pneg %p112
        $region46: #{input_parametrization_cf.1} parent=43 // pred_check_branch
          %922 = sbr.rel (%p920) target = $region48
        $region47: #{input_parametrization_cf.1} parent=43 // pred_region
          %s923 = sand.u32 %s97, 1
          %s924 = scalar_lea.sflag [#allocation4], %s923
          %s925 = sand.u32 %s97, 1
          %s926 = smul.addr %s925, 40
          %s927 = scalar_lea.vmem [#allocation5], %s926
          %928 = dma.done %s924, 640
        $region48: #{input_parametrization_cf.1} parent=43 // pred_fallthru
          _
      $region44: #{input_parametrization_cf.1} parent=5 // pred_fallthru
        _
    $region6: #{input_parametrization_cf.1} parent=1 // loop_footer
      %s19 = sadd.s32 1, %s15
    $region7: #{input_parametrization_cf.1} parent=1 // loop_footer_branch
      %14 = sbr.rel target = $region3
    $region8: #{input_parametrization_cf.1} parent=1 // loop_exit
      _
    %929 = vsyncpa [#allocation3], 1
    %s930 = scalar_lea.sflag [#allocation3], 1
    %931 = vsyncpa %s930, 1
    %932 = vsyncpa [#allocation4], 1
    %s933 = scalar_lea.sflag [#allocation4], 1
    %934 = vsyncpa %s933, 1

</llo_original>
